<compile_context>
chip_gen: v5e
topology: v5e:2x2
jax: 0.10.0
libtpu: 0.0.40
codegen_flags: <defaults>
</compile_context>

<pallas_src>
import functools

import jax
import jax.numpy as jnp
import numpy as np
from jax import lax
from jax.experimental import pallas as pl
from jax.experimental.pallas import tpu as pltpu


def spatial_attention_kernel(x_ref, w12_ref, w3sel_ref, bs_ref, vs_ref, out_ref,
                             *, n_nodes, b_blk):
    """One grid step processes b_blk batch elements.

    Refs (VMEM views):
      x_ref    : (b_blk * N, F*T)   lane-dense slab of b_blk batches
      w12_ref  : (F*T, T)           W1 folded into W2
      w3sel_ref: (F*T, T)           W3 selector matrix (computes W3 @ x as a matmul)
      bs_ref   : (N, N)
      vs_ref   : (N, N)
      out_ref  : (b_blk, N, N)
    """
    x = x_ref[...]                                                            # (b_blk*N, F*T)

    # One dense MXU matmul per projection over all batches in this step.
    lhs_all = jnp.dot(x, w12_ref[...], preferred_element_type=jnp.float32)    # (b_blk*N, T)
    w3x_all = jnp.dot(x, w3sel_ref[...], preferred_element_type=jnp.float32)  # (b_blk*N, T)

    bs = bs_ref[...]                                                          # (N, N)
    vs = vs_ref[...]                                                          # (N, N)

    # Per-batch (N, N) products; b_blk is small and static -> unrolled Python loop
    # with sublane-aligned static slices (N is a multiple of 8).
    for i in range(b_blk):
        lo = i * n_nodes
        hi = lo + n_nodes
        lhs = lhs_all[lo:hi, :]                                               # (N, T)
        w3x = w3x_all[lo:hi, :]                                               # (N, T)

        # product = lhs @ w3x^T without an explicit XLU transpose.
        product = lax.dot_general(lhs, w3x, (((1,), (1,)), ((), ())),
                                  preferred_element_type=jnp.float32)         # (N, N)

        sig = jax.nn.sigmoid(product + bs)                                    # (N, N)
        s = jnp.dot(vs, sig, preferred_element_type=jnp.float32)              # (N, N)

        # softmax over dim=1 of the (B, N, N) output == axis 0 of this (N, N) tile.
        s = s - jnp.max(s, axis=0, keepdims=True)
        e = jnp.exp(s)
        inv = pl.reciprocal(jnp.sum(e, axis=0, keepdims=True), approx=False)  # keep 1e-5 tol
        out_ref[i] = e * inv


def spatial_attention(x, W1, W2, W3, bs, Vs, *, b_blk=None):
    """x: (B, N, F, T) float32. Returns (B, N, N) float32."""
    B, N, F, T = x.shape
    FT = F * T

    x = x.astype(jnp.float32)
    W1 = W1.astype(jnp.float32)
    W2 = W2.astype(jnp.float32)
    W3 = W3.astype(jnp.float32)
    bs = bs.astype(jnp.float32)
    Vs = Vs.astype(jnp.float32)

    # Fold W1 into W2:  lhs[n,t] = sum_{f,t'} x[n,f,t'] * W1[t'] * W2[f,t]
    W12 = (W1[None, :, None] * W2[:, None, :]).reshape(FT, T)                 # (F*T, T)
    # W3 contraction as a matmul:  (W3 @ x)[n,t] = sum_{f,t'} x[n,f,t'] * W3[f] * delta(t',t)
    W3sel = (W3[:, None, None] * jnp.eye(T, dtype=jnp.float32)[None, :, :]).reshape(FT, T)

    if b_blk is None:
        # Split the batch into (at most) 2 parallel grid steps so both v7x TensorCores
        # get work; single fused step when B == 1.
        # TODO(synk): on 1-TC chips (v5e/v6e) a single fused step (b_blk=B) is optimal.
        b_blk = -(-B // 2) if B > 1 else 1
    num_steps = -(-B // b_blk)
    B_pad = num_steps * b_blk

    # Lane-dense input: (B, N, F, T) -> (B*N, F*T), done in HBM (free XLA reshape).
    x2d = x.reshape(B * N, FT)
    if B_pad != B:
        x2d = jnp.pad(x2d, ((0, (B_pad - B) * N), (0, 0)))

    kernel = functools.partial(spatial_attention_kernel, n_nodes=N, b_blk=b_blk)

    out = pl.pallas_call(
        kernel,
        out_shape=jax.ShapeDtypeStruct((B_pad, N, N), jnp.float32),
        grid_spec=pltpu.PrefetchScalarGridSpec(
            num_scalar_prefetch=0,
            grid=(num_steps,),
            in_specs=[
                pl.BlockSpec((b_blk * N, FT), lambda i: (i, 0)),   # x slab for this step
                pl.BlockSpec((FT, T), lambda i: (0, 0)),           # W12 (resident)
                pl.BlockSpec((FT, T), lambda i: (0, 0)),           # W3sel (resident)
                pl.BlockSpec((N, N), lambda i: (0, 0)),            # bs (resident)
                pl.BlockSpec((N, N), lambda i: (0, 0)),            # Vs (resident)
            ],
            out_specs=pl.BlockSpec((b_blk, N, N), lambda i: (i, 0, 0)),
        ),
        compiler_params=pltpu.CompilerParams(
            dimension_semantics=("parallel",)),
    )(x2d, W12, W3sel, bs.reshape(N, N), Vs)

    return out[:B]


def spatial_attention_ref(x, W1, W2, W3, bs, Vs):
    """Pure-JAX reference mirroring the PyTorch forward exactly."""
    lhs = jnp.matmul(jnp.matmul(x, W1), W2)                      # (B, N, T)
    rhs = jnp.einsum('f,bnft->bnt', W3, x)                       # torch.matmul(W3, x): (B, N, T)
    rhs = jnp.swapaxes(rhs, -1, -2)                              # (B, T, N)
    product = jnp.matmul(lhs, rhs)                               # (B, N, N)
    S = jnp.matmul(Vs, jax.nn.sigmoid(product + bs))             # (B, N, N)
    return jax.nn.softmax(S, axis=1)


if __name__ == "__main__":
    # Small shapes: B=2, N_nodes=16, F_in=4, T_in=8
    B, N, F, T = 2, 16, 4, 8

    key = jax.random.PRNGKey(0)
    k_x, k_w1, k_w2, k_w3, k_bs, k_vs = jax.random.split(key, 6)

    # Deterministic parameter init (mimics reset_parameters):
    #   dim > 1 -> xavier_uniform ; dim == 1 -> uniform[0, 1)
    def xavier_uniform(k, shape):
        fan_in, fan_out = shape[-1], shape[-2]
        bound = float(np.sqrt(6.0 / (fan_in + fan_out)))
        return jax.random.uniform(k, shape, jnp.float32, -bound, bound)

    W1 = jax.random.uniform(k_w1, (T,), jnp.float32)             # (T,)
    W2 = xavier_uniform(k_w2, (F, T))                            # (F, T)
    W3 = jax.random.uniform(k_w3, (F,), jnp.float32)             # (F,)
    bs = xavier_uniform(k_bs, (1, N, N))                         # (1, N, N)
    Vs = xavier_uniform(k_vs, (N, N))                            # (N, N)

    x = jax.random.normal(k_x, (B, N, F, T), jnp.float32)

    ref = spatial_attention_ref(x, W1, W2, W3, bs, Vs)

    # Default: 2 parallel grid steps (1 batch each) -> both v7x TensorCores busy.
    out = jax.block_until_ready(spatial_attention(x, W1, W2, W3, bs, Vs))
    np.testing.assert_allclose(np.asarray(out), np.asarray(ref), rtol=1e-5, atol=1e-5)

    # Fully fused path: all batches in one grid step (optimal on 1-TC v5e/v6e).
    out_fused = jax.block_until_ready(spatial_attention(x, W1, W2, W3, bs, Vs, b_blk=B))
    np.testing.assert_allclose(np.asarray(out_fused), np.asarray(ref), rtol=1e-5, atol=1e-5)

    print("KERNEL_OK")
</pallas_src>

<mosaic_0001>
module attributes {stable_mosaic.version = 11 : i64} {
  func.func @spatial_attention_kernel(%arg0: i32, %arg1: memref<16x32xf32, #tpu.memory_space<vmem>>, %arg2: memref<32x8xf32, #tpu.memory_space<vmem>>, %arg3: memref<32x8xf32, #tpu.memory_space<vmem>>, %arg4: memref<16x16xf32, #tpu.memory_space<vmem>>, %arg5: memref<16x16xf32, #tpu.memory_space<vmem>>, %arg6: memref<1x16x16xf32, #tpu.memory_space<vmem>>) attributes {dimension_semantics = [#tpu.dimension_semantics<parallel>], iteration_bounds = array<i64: 2>, scalar_prefetch = 0 : i64, scratch_operands = 0 : i64, tpu.core_type = #tpu.core_type<tc>, window_params = [{transform_indices = @transform_0, window_bounds = array<i64: 16, 32>}, {pipeline_mode = #tpu.pipeline_mode<synchronous>, transform_indices = @transform_1, window_bounds = array<i64: 32, 8>}, {pipeline_mode = #tpu.pipeline_mode<synchronous>, transform_indices = @transform_2, window_bounds = array<i64: 32, 8>}, {pipeline_mode = #tpu.pipeline_mode<synchronous>, transform_indices = @transform_3, window_bounds = array<i64: 16, 16>}, {pipeline_mode = #tpu.pipeline_mode<synchronous>, transform_indices = @transform_4, window_bounds = array<i64: 16, 16>}, {transform_indices = @transform_5, window_bounds = array<i64: 1, 16, 16>}]} {
    %c0 = arith.constant 0 : index
    %c0_0 = arith.constant 0 : index
    %0 = vector.load %arg1[%c0, %c0_0] : memref<16x32xf32, #tpu.memory_space<vmem>>, vector<16x32xf32>
    %c0_1 = arith.constant 0 : index
    %c0_2 = arith.constant 0 : index
    %1 = vector.load %arg2[%c0_1, %c0_2] : memref<32x8xf32, #tpu.memory_space<vmem>>, vector<32x8xf32>
    %cst = arith.constant dense<0.000000e+00> : vector<16x8xf32>
    %2 = tpu.matmul %0, %1, %cst {dimension_numbers = #tpu.dot_dimension_numbers<[1], [0], [0], [1], [0, 0, 1, 1], [], []>} : vector<16x32xf32>, vector<32x8xf32>, vector<16x8xf32> -> vector<16x8xf32>
    %c0_3 = arith.constant 0 : index
    %c0_4 = arith.constant 0 : index
    %3 = vector.load %arg3[%c0_3, %c0_4] : memref<32x8xf32, #tpu.memory_space<vmem>>, vector<32x8xf32>
    %cst_5 = arith.constant dense<0.000000e+00> : vector<16x8xf32>
    %4 = tpu.matmul %0, %3, %cst_5 {dimension_numbers = #tpu.dot_dimension_numbers<[1], [0], [0], [1], [0, 0, 1, 1], [], []>} : vector<16x32xf32>, vector<32x8xf32>, vector<16x8xf32> -> vector<16x8xf32>
    %c0_6 = arith.constant 0 : index
    %c0_7 = arith.constant 0 : index
    %5 = vector.load %arg4[%c0_6, %c0_7] : memref<16x16xf32, #tpu.memory_space<vmem>>, vector<16x16xf32>
    %c0_8 = arith.constant 0 : index
    %c0_9 = arith.constant 0 : index
    %6 = vector.load %arg5[%c0_8, %c0_9] : memref<16x16xf32, #tpu.memory_space<vmem>>, vector<16x16xf32>
    %cst_10 = arith.constant dense<0.000000e+00> : vector<16x16xf32>
    %7 = tpu.matmul %2, %4, %cst_10 {dimension_numbers = #tpu.dot_dimension_numbers<[1], [1], [0], [0], [0, 0, 1, 0], [], []>} : vector<16x8xf32>, vector<16x8xf32>, vector<16x16xf32> -> vector<16x16xf32>
    %8 = arith.addf %7, %5 : vector<16x16xf32>
    %9 = arith.negf %8 : vector<16x16xf32>
    %10 = math.exp %9 : vector<16x16xf32>
    %cst_11 = arith.constant 1.000000e+00 : f32
    %11 = vector.broadcast %cst_11 : f32 to vector<16x16xf32>
    %12 = arith.addf %11, %10 : vector<16x16xf32>
    %13 = arith.divf %11, %12 : vector<16x16xf32>
    %cst_12 = arith.constant dense<0.000000e+00> : vector<16x16xf32>
    %14 = tpu.matmul %6, %13, %cst_12 {dimension_numbers = #tpu.dot_dimension_numbers<[1], [0], [0], [1], [0, 0, 1, 1], [], []>} : vector<16x16xf32>, vector<16x16xf32>, vector<16x16xf32> -> vector<16x16xf32>
    %cst_13 = arith.constant dense<0xFF800000> : vector<16xf32>
    %15 = vector.multi_reduction <maximumf>, %14, %cst_13 [0] : vector<16x16xf32> to vector<16xf32>
    %16 = vector.shape_cast %15 : vector<16xf32> to vector<1x16xf32>
    %17 = vector.broadcast %16 : vector<1x16xf32> to vector<16x16xf32>
    %18 = arith.subf %14, %17 : vector<16x16xf32>
    %19 = math.exp %18 : vector<16x16xf32>
    %cst_14 = arith.constant dense<0.000000e+00> : vector<16xf32>
    %20 = vector.multi_reduction <add>, %19, %cst_14 [0] : vector<16x16xf32> to vector<16xf32>
    %21 = vector.shape_cast %20 : vector<16xf32> to vector<1x16xf32>
    %22 = tpu.reciprocal %21 : vector<1x16xf32> -> vector<1x16xf32>
    %23 = vector.broadcast %22 : vector<1x16xf32> to vector<16x16xf32>
    %24 = arith.mulf %19, %23 : vector<16x16xf32>
    %c0_15 = arith.constant 0 : index
    %c0_16 = arith.constant 0 : index
    %c0_17 = arith.constant 0 : index
    %25 = vector.load %arg6[%c0_15, %c0_16, %c0_17] : memref<1x16x16xf32, #tpu.memory_space<vmem>>, vector<1x16x16xf32>
    %26 = vector.shape_cast %25 : vector<1x16x16xf32> to vector<16x16xf32>
    %27 = vector.shape_cast %24 : vector<16x16xf32> to vector<1x16x16xf32>
    tpu.vector_store %arg6[%c0_15, %c0_16, %c0_17], %27 {strides = array<i32>} : memref<1x16x16xf32, #tpu.memory_space<vmem>>, vector<1x16x16xf32>,
    return
  }
  func.func @transform_0(%arg0: i32) -> (i32, i32) {
    %c0_i32 = arith.constant 0 : i32
    %c0_i32_0 = arith.constant 0 : i32
    return %arg0, %c0_i32 : i32, i32
  }
  func.func @transform_1(%arg0: i32) -> (i32, i32) {
    %c0_i32 = arith.constant 0 : i32
    %c0_i32_0 = arith.constant 0 : i32
    %c0_i32_1 = arith.constant 0 : i32
    return %c0_i32, %c0_i32_0 : i32, i32
  }
  func.func @transform_2(%arg0: i32) -> (i32, i32) {
    %c0_i32 = arith.constant 0 : i32
    %c0_i32_0 = arith.constant 0 : i32
    %c0_i32_1 = arith.constant 0 : i32
    return %c0_i32, %c0_i32_0 : i32, i32
  }
  func.func @transform_3(%arg0: i32) -> (i32, i32) {
    %c0_i32 = arith.constant 0 : i32
    %c0_i32_0 = arith.constant 0 : i32
    %c0_i32_1 = arith.constant 0 : i32
    return %c0_i32, %c0_i32_0 : i32, i32
  }
  func.func @transform_4(%arg0: i32) -> (i32, i32) {
    %c0_i32 = arith.constant 0 : i32
    %c0_i32_0 = arith.constant 0 : i32
    %c0_i32_1 = arith.constant 0 : i32
    return %c0_i32, %c0_i32_0 : i32, i32
  }
  func.func @transform_5(%arg0: i32) -> (i32, i32, i32) {
    %c0_i32 = arith.constant 0 : i32
    %c0_i32_0 = arith.constant 0 : i32
    %c0_i32_1 = arith.constant 0 : i32
    return %arg0, %c0_i32, %c0_i32_0 : i32, i32, i32
  }
}

</mosaic_0001>

<llo_original>
// kernel: tpu_custom_call.1
$region0: #{tpu_custom_call.1}
  #allocation0 [shape = 'u32[]', space=smem, size = 0x4, offset = 0x4, fixed_abs, tag = 'smem constant byte address 0x4 - core index']
  #allocation1 [shape = 'u32[72,128]{1,0:T(1,128)}', space=vmem, size = 0x9000, scoped, tag = 'internal scratch']
  %s0 = inlined_call_operand.vmem [shape: f32[32,32], index: 0, kind: input, shape index: {}]
  %s1 = inlined_call_operand.vmem [shape: f32[32,8], index: 1, kind: input, shape index: {}]
  %s2 = inlined_call_operand.vmem [shape: f32[32,8], index: 2, kind: input, shape index: {}]
  %s3 = inlined_call_operand.vmem [shape: f32[16,16], index: 3, kind: input, shape index: {}]
  %s4 = inlined_call_operand.vmem [shape: f32[16,16], index: 4, kind: input, shape index: {}]
  %s5 = inlined_call_operand.hbm [shape: f32[2,16,16], index: 5, kind: output, shape index: {}]
  %s6 = sld [smem:[#allocation0]]
  $region53: #{tpu_custom_call.1} parent=0
    _
  %s8 = ssub.s32 1, %s6
  %s9 = scalar_select 0, %s8, %s6
  $region1: #{tpu_custom_call.1} parent=0
    #allocation2 [shape = 'u8[16384]{0}', space=vmem, size = 0x4000, scoped, tag = 'output window, operand 0']
    #allocation3 [shape = 's32[2]{0}', space=sflag, size = 0x8, scoped, tag = 'scoped memory for tpu_custom_call.1']
    %10 = vsyncpa [#allocation3], 0
    %s11 = scalar_lea.sflag [#allocation3], 1
    %12 = vsyncpa %s11, 0
    loop: start=0, step=1, limit=4
    $region2: #{tpu_custom_call.1} parent=1 // loop_pre_header
      _
    $region3: #{tpu_custom_call.1} parent=1 // loop_header
      %s14 = sphi 0, %s18
      %p15 = scmp.ge.s32.totalorder %s14, 4
      %s24 = sphi 0, %s26
      %s27 = sphi 0, %s24
      %s28 = sphi 0, %s27
      %s44 = sphi 0, %s28
      %s48 = sphi 0, %s48
      %s50 = sphi 0, %s48
      %s51 = sphi 0, %s50
      %s65 = sphi 0, %s51
      %s69 = sphi 0, %s69
      %s71 = sphi 0, %s69
      %s72 = sphi 0, %s71
      %s86 = sphi 0, %s72
      %s90 = sphi 0, %s90
      %s92 = sphi 0, %s90
      %s93 = sphi 0, %s92
      %s107 = sphi 0, %s93
      %s111 = sphi 0, %s111
      %s113 = sphi 0, %s111
      %s114 = sphi 0, %s113
      %s128 = sphi 0, %s114
      %s134 = sphi 0, %s136
      %s137 = sphi 0, %s134
      %s138 = sphi 0, %s137
      %s154 = sphi 0, %s138
    $region4: #{tpu_custom_call.1} parent=1 // loop_header_branch
      %17 = sbr.rel (%p15) target = $region8
    $region5: #{tpu_custom_call.1} parent=1 // loop_body
      %s19 = ssub.s32 %s14, 1
      %s20 = ssub.s32 %s14, 2
      %s21 = sadd.s32 %s14, 1
      %s22 = ssub.s32 %s14, %s21
      %p23 = scmp.eq.s32.totalorder %s22, 0
      %s25 = sadd.s32 %s24, 1
      %s26 = scalar_select %p23, %s24, %s25
      %p29 = pneg %p23
      %p30 = scmp.eq.s32.totalorder %s14, 1
      %p31 = por %p29, %p30
      %p32 = scmp.ne.s32.totalorder %s24, %s27
      %p33 = scmp.eq.s32.totalorder %s14, 0
      %p34 = por %p32, %p33
      %p35 = scmp.ne.s32.totalorder %s24, %s27
      %p36 = scmp.eq.s32.totalorder %s19, 1
      %p37 = por %p35, %p36
      %p38 = scmp.ne.s32.totalorder %s27, %s28
      %p39 = scmp.eq.s32.totalorder %s19, 0
      %p40 = por %p38, %p39
      %p41 = scmp.ne.s32.totalorder %s27, %s28
      %p42 = scmp.eq.s32.totalorder %s20, 1
      %p43 = por %p41, %p42
      %p45 = scmp.ne.s32.totalorder %s28, %s44
      %p46 = scmp.eq.s32.totalorder %s20, 0
      %p47 = por %p45, %p46
      %s49 = sadd.s32 %s48, 1
      %p52 = scmp.eq.s32.totalorder %s14, 1
      %p53 = scmp.ne.s32.totalorder %s48, %s50
      %p54 = scmp.eq.s32.totalorder %s14, 0
      %p55 = por %p53, %p54
      %p56 = scmp.ne.s32.totalorder %s48, %s50
      %p57 = scmp.eq.s32.totalorder %s19, 1
      %p58 = por %p56, %p57
      %p59 = scmp.ne.s32.totalorder %s50, %s51
      %p60 = scmp.eq.s32.totalorder %s19, 0
      %p61 = por %p59, %p60
      %p62 = scmp.ne.s32.totalorder %s50, %s51
      %p63 = scmp.eq.s32.totalorder %s20, 1
      %p64 = por %p62, %p63
      %p66 = scmp.ne.s32.totalorder %s51, %s65
      %p67 = scmp.eq.s32.totalorder %s20, 0
      %p68 = por %p66, %p67
      %s70 = sadd.s32 %s69, 1
      %p73 = scmp.eq.s32.totalorder %s14, 1
      %p74 = scmp.ne.s32.totalorder %s69, %s71
      %p75 = scmp.eq.s32.totalorder %s14, 0
      %p76 = por %p74, %p75
      %p77 = scmp.ne.s32.totalorder %s69, %s71
      %p78 = scmp.eq.s32.totalorder %s19, 1
      %p79 = por %p77, %p78
      %p80 = scmp.ne.s32.totalorder %s71, %s72
      %p81 = scmp.eq.s32.totalorder %s19, 0
      %p82 = por %p80, %p81
      %p83 = scmp.ne.s32.totalorder %s71, %s72
      %p84 = scmp.eq.s32.totalorder %s20, 1
      %p85 = por %p83, %p84
      %p87 = scmp.ne.s32.totalorder %s72, %s86
      %p88 = scmp.eq.s32.totalorder %s20, 0
      %p89 = por %p87, %p88
      %s91 = sadd.s32 %s90, 1
      %p94 = scmp.eq.s32.totalorder %s14, 1
      %p95 = scmp.ne.s32.totalorder %s90, %s92
      %p96 = scmp.eq.s32.totalorder %s14, 0
      %p97 = por %p95, %p96
      %p98 = scmp.ne.s32.totalorder %s90, %s92
      %p99 = scmp.eq.s32.totalorder %s19, 1
      %p100 = por %p98, %p99
      %p101 = scmp.ne.s32.totalorder %s92, %s93
      %p102 = scmp.eq.s32.totalorder %s19, 0
      %p103 = por %p101, %p102
      %p104 = scmp.ne.s32.totalorder %s92, %s93
      %p105 = scmp.eq.s32.totalorder %s20, 1
      %p106 = por %p104, %p105
      %p108 = scmp.ne.s32.totalorder %s93, %s107
      %p109 = scmp.eq.s32.totalorder %s20, 0
      %p110 = por %p108, %p109
      %s112 = sadd.s32 %s111, 1
      %p115 = scmp.eq.s32.totalorder %s14, 1
      %p116 = scmp.ne.s32.totalorder %s111, %s113
      %p117 = scmp.eq.s32.totalorder %s14, 0
      %p118 = por %p116, %p117
      %p119 = scmp.ne.s32.totalorder %s111, %s113
      %p120 = scmp.eq.s32.totalorder %s19, 1
      %p121 = por %p119, %p120
      %p122 = scmp.ne.s32.totalorder %s113, %s114
      %p123 = scmp.eq.s32.totalorder %s19, 0
      %p124 = por %p122, %p123
      %p125 = scmp.ne.s32.totalorder %s113, %s114
      %p126 = scmp.eq.s32.totalorder %s20, 1
      %p127 = por %p125, %p126
      %p129 = scmp.ne.s32.totalorder %s114, %s128
      %p130 = scmp.eq.s32.totalorder %s20, 0
      %p131 = por %p129, %p130
      %s132 = ssub.s32 %s14, %s21
      %p133 = scmp.eq.s32.totalorder %s132, 0
      %s135 = sadd.s32 %s134, 1
      %s136 = scalar_select %p133, %s134, %s135
      %p139 = pneg %p133
      %p140 = scmp.eq.s32.totalorder %s14, 1
      %p141 = por %p139, %p140
      %p142 = scmp.ne.s32.totalorder %s134, %s137
      %p143 = scmp.eq.s32.totalorder %s14, 0
      %p144 = por %p142, %p143
      %p145 = scmp.ne.s32.totalorder %s134, %s137
      %p146 = scmp.eq.s32.totalorder %s19, 1
      %p147 = por %p145, %p146
      %p148 = scmp.ne.s32.totalorder %s137, %s138
      %p149 = scmp.eq.s32.totalorder %s19, 0
      %p150 = por %p148, %p149
      %p151 = scmp.ne.s32.totalorder %s137, %s138
      %p152 = scmp.eq.s32.totalorder %s20, 1
      %p153 = por %p151, %p152
      %p155 = scmp.ne.s32.totalorder %s138, %s154
      %p156 = scmp.eq.s32.totalorder %s20, 0
      %p157 = por %p155, %p156
      %p158 = scmp.le.s32.totalorder 1, %s14
      %p159 = scmp.lt.s32.totalorder %s14, 3
      %p160 = pnand %p158, %p159
      %p161 = pneg %p160
      // Predicated region
      $region9: #{tpu_custom_call.1} parent=5 // pred_check
        _
      $region10: #{tpu_custom_call.1} parent=5 // pred_check_branch
        %163 = sbr.rel (%p160) target = $region12
      $region11: #{tpu_custom_call.1} parent=5 // pred_region
        %s164 = ssub.s32 %s14, 1
        // Predicated region
        $region13: #{tpu_custom_call.1} parent=11 // pred_check
          %p165 = pneg %p61
        $region14: #{tpu_custom_call.1} parent=11 // pred_check_branch
          %167 = sbr.rel (%p165) target = $region16
        $region15: #{tpu_custom_call.1} parent=11 // pred_region
          _
        $region16: #{tpu_custom_call.1} parent=11 // pred_fallthru
          _
        // Predicated region
        $region17: #{tpu_custom_call.1} parent=11 // pred_check
          %p168 = pneg %p82
        $region18: #{tpu_custom_call.1} parent=11 // pred_check_branch
          %170 = sbr.rel (%p168) target = $region20
        $region19: #{tpu_custom_call.1} parent=11 // pred_region
          _
        $region20: #{tpu_custom_call.1} parent=11 // pred_fallthru
          _
        // Predicated region
        $region21: #{tpu_custom_call.1} parent=11 // pred_check
          %p171 = pneg %p103
        $region22: #{tpu_custom_call.1} parent=11 // pred_check_branch
          %173 = sbr.rel (%p171) target = $region24
        $region23: #{tpu_custom_call.1} parent=11 // pred_region
          _
        $region24: #{tpu_custom_call.1} parent=11 // pred_fallthru
          _
        // Predicated region
        $region25: #{tpu_custom_call.1} parent=11 // pred_check
          %p174 = pneg %p124
        $region26: #{tpu_custom_call.1} parent=11 // pred_check_branch
          %176 = sbr.rel (%p174) target = $region28
        $region27: #{tpu_custom_call.1} parent=11 // pred_region
          _
        $region28: #{tpu_custom_call.1} parent=11 // pred_fallthru
          _
      $region12: #{tpu_custom_call.1} parent=5 // pred_fallthru
        _
      %p177 = scmp.lt.s32.totalorder %s14, 2
      // Predicated region
      $region29: #{tpu_custom_call.1} parent=5 // pred_check
        %p178 = pneg %p177
      $region30: #{tpu_custom_call.1} parent=5 // pred_check_branch
        %180 = sbr.rel (%p178) target = $region32
      $region31: #{tpu_custom_call.1} parent=5 // pred_region
        // Predicated region
        $region33: #{tpu_custom_call.1} parent=31 // pred_check
          %p181 = pneg %p34
        $region34: #{tpu_custom_call.1} parent=31 // pred_check_branch
          %183 = sbr.rel (%p181) target = $region36
        $region35: #{tpu_custom_call.1} parent=31 // pred_region
          %s184 = smul.u32 2, %s14
          %p185 = scmp.lt.s32.totalorder %s184, 3
          %s186 = scalar_select %p185, %s184, 3
          %s187 = smul.addr %s186, 8
          %s188 = scalar_lea.vmem %s0, %s187
          %s189 = smul.u32 2, %s14
        $region36: #{tpu_custom_call.1} parent=31 // pred_fallthru
          _
      $region32: #{tpu_custom_call.1} parent=5 // pred_fallthru
        _
      %p190 = scmp.le.s32.totalorder 1, %s14
      %p191 = scmp.lt.s32.totalorder %s14, 3
      %p192 = pnand %p190, %p191
      %p193 = pneg %p192
      // Predicated region
      $region37: #{tpu_custom_call.1} parent=5 // pred_check
        _
      $region38: #{tpu_custom_call.1} parent=5 // pred_check_branch
        %195 = sbr.rel (%p192) target = $region40
      $region39: #{tpu_custom_call.1} parent=5 // pred_region
        %s196 = ssub.s32 %s14, 1
        %s197 = smul.u32 2, %s19
        %p198 = scmp.lt.s32.totalorder %s197, 3
        %s199 = scalar_select %p198, %s197, 3
        %s200 = smul.addr %s199, 8
        %s201 = scalar_lea.vmem %s0, %s200
        %p202 = pneg %p40
        %p203 = pneg %p37
        %p204 = pneg %p61
        %p205 = pneg %p58
        %p206 = pneg %p82
        %p207 = pneg %p79
        %p208 = pneg %p103
        %p209 = pneg %p100
        %p210 = pneg %p124
        %p211 = pneg %p121
        %p212 = pneg %p150
        %p213 = pneg %p147
        %s214 = sand.u32 %s137, 1
        %s215 = scalar_lea.sflag [#allocation3], %s214
        %s216 = sand.u32 %s137, 1
        %s217 = smul.addr %s216, 16
        %s218 = scalar_lea.vmem [#allocation2], %s217
        %s219 = smul.u32 2, %s19
        %p220 = scmp.lt.s32.totalorder %s219, 3
        %s221 = scalar_select %p220, %s219, 3
        %s222 = smul.addr %s221, 8
        %s223 = scalar_lea.vmem %s0, %s222
        %s224 = smul.u32 2, %s19
        %v225 = vld [vmem:[%s223] sm:$0xff]
        %v226 = vld [vmem:[%s223 + $0x8] sm:$0xff]
        %v227 = vld [vmem:[%s1] sm:$0xff]
        %v228 = vld [vmem:[%s1 + $0x8] sm:$0xff]
        %v229 = vld [vmem:[%s1 + $0x10] sm:$0xff]
        %v230 = vld [vmem:[%s1 + $0x18] sm:$0xff]
        %vm231 = vcmask 261120
        %v233 = vsel %vm231, %v225, 0
        %v236 = vsel %vm231, %v226, 0
        %238 = vmatpush.msra.mxu0 0.0
        %239 = vmatpush.msra.mxu0 0.0
        %240 = vmatpush.msra.mxu0 0.0
        %241 = vmatpush.msra.mxu0 0.0
        %242 = vmatpush.msra.mxu0 0.0
        %243 = vmatpush.msra.mxu0 0.0
        %244 = vmatpush.msra.mxu0 0.0
        %245 = vmatpush.msra.mxu0 0.0
        %246 = vmatpush.msra.mxu0 0.0
        %247 = vmatpush.msra.mxu0 0.0
        %248 = vmatpush.msra.mxu0 0.0
        %249 = vmatpush.msra.mxu0 0.0
        %250 = vmatpush.msra.mxu0 %v230
        %251 = vmatpush.msra.mxu0 %v229
        %252 = vmatpush.msra.mxu0 %v228
        %253 = vmatpush.msra.mxu0 %v227
        %254 = vmatmul.f32.gmra.mxu0 %v233
        %v255 = vpop.f32.mrf.mxu0
        %v256 = vadd.f32 0.0, %v255
        %257 = vmatmul.f32.gmra.mxu0 %v236
        %v258 = vpop.f32.mrf.mxu0
        %v259 = vadd.f32 0.0, %v258
        %260 = vdwg.mxu0
        %v261 = vld [vmem:[%s2] sm:$0xff]
        %v262 = vld [vmem:[%s2 + $0x8] sm:$0xff]
        %v263 = vld [vmem:[%s2 + $0x10] sm:$0xff]
        %v264 = vld [vmem:[%s2 + $0x18] sm:$0xff]
        %265 = vmatpush.msra.mxu0 0.0
        %266 = vmatpush.msra.mxu0 0.0
        %267 = vmatpush.msra.mxu0 0.0
        %268 = vmatpush.msra.mxu0 0.0
        %269 = vmatpush.msra.mxu0 0.0
        %270 = vmatpush.msra.mxu0 0.0
        %271 = vmatpush.msra.mxu0 0.0
        %272 = vmatpush.msra.mxu0 0.0
        %273 = vmatpush.msra.mxu0 0.0
        %274 = vmatpush.msra.mxu0 0.0
        %275 = vmatpush.msra.mxu0 0.0
        %276 = vmatpush.msra.mxu0 0.0
        %277 = vmatpush.msra.mxu0 %v264
        %278 = vmatpush.msra.mxu0 %v263
        %279 = vmatpush.msra.mxu0 %v262
        %280 = vmatpush.msra.mxu0 %v261
        %281 = vmatmul.f32.gmra.mxu0 %v233
        %v282 = vpop.f32.mrf.mxu0
        %v283 = vadd.f32 0.0, %v282
        %284 = vmatmul.f32.gmra.mxu0 %v236
        %v285 = vpop.f32.mrf.mxu0
        %v286 = vadd.f32 0.0, %v285
        %287 = vdwg.mxu0
        %v288 = vld [vmem:[%s3] sm:$0xff]
        %v289 = vld [vmem:[%s3 + $0x8] sm:$0xff]
        %v290 = vld [vmem:[%s4] sm:$0xff]
        %v291 = vld [vmem:[%s4 + $0x8] sm:$0xff]
        %vm292 = vcmask 64512
        %v294 = vsel %vm292, %v256, 0
        %v297 = vsel %vm292, %v259, 0
        %v300 = vsel %vm292, %v283, 0
        %v303 = vsel %vm292, %v286, 0
        %305 = vmatpush.xpose.msra.mxu0 0.0
        %306 = vmatpush.xpose.msra.mxu0 0.0
        %307 = vmatpush.xpose.msra.mxu0 0.0
        %308 = vmatpush.xpose.msra.mxu0 0.0
        %309 = vmatpush.xpose.msra.mxu0 0.0
        %310 = vmatpush.xpose.msra.mxu0 0.0
        %311 = vmatpush.xpose.msra.mxu0 0.0
        %312 = vmatpush.xpose.msra.mxu0 0.0
        %313 = vmatpush.xpose.msra.mxu0 0.0
        %314 = vmatpush.xpose.msra.mxu0 0.0
        %315 = vmatpush.xpose.msra.mxu0 0.0
        %316 = vmatpush.xpose.msra.mxu0 0.0
        %317 = vmatpush.xpose.msra.mxu0 0.0
        %318 = vmatpush.xpose.msra.mxu0 0.0
        %319 = vmatpush.xpose.msra.mxu0 %v303
        %320 = vmatpush.xpose.msra.mxu0 %v300
        %321 = vmatmul.f32.gmra.mxu0 %v294
        %v322 = vpop.f32.mrf.mxu0
        %v323 = vadd.f32 %v288, %v322
        %324 = vmatmul.f32.gmra.mxu0 %v297
        %v325 = vpop.f32.mrf.mxu0
        %v326 = vadd.f32 %v289, %v325
        %327 = vdwg.mxu0
        %v328 = vxor.u32 %v323, 2147483648
        %v329 = vxor.u32 %v326, 2147483648
        %v330 = vmul.f32 %v328, 1.442695
        %v331 = vpow.pop %v330
        %v332 = vmul.f32 %v329, 1.442695
        %v333 = vpow.pop %v332
        %v334 = vadd.f32 %v331, 1.0
        %v335 = vadd.f32 %v333, 1.0
        %v336 = vrcp.pop %v334
        %v337 = vmul.f32 %v334, %v336
        %v338 = vsub.f32 1.0, %v337
        %v339 = vmul.f32 %v336, %v338
        %v340 = vadd.f32 %v336, %v339
        %vm341 = vweird.f32 %v334
        %vm342 = vweird.f32 %v336
        %vm343 = vmor %vm341, %vm342
        %v344 = vsel %vm343, %v336, %v340
        %v345 = vand.u32 2147483647, %v334
        %vm346 = vcmp.eq.f32.partialorder %v345, 8.507059e+37
        %v347 = vand.u32 %v334, 2147483648
        %v348 = vor.u32 1.1754944e-38, %v347
        %v349 = vsel %vm346, %v348, %v344
        %v350 = vmul.f32 1.0, %v349
        %v351 = vrcp.pop %v335
        %v352 = vmul.f32 %v335, %v351
        %v353 = vsub.f32 1.0, %v352
        %v354 = vmul.f32 %v351, %v353
        %v355 = vadd.f32 %v351, %v354
        %vm356 = vweird.f32 %v335
        %vm357 = vweird.f32 %v351
        %vm358 = vmor %vm356, %vm357
        %v359 = vsel %vm358, %v351, %v355
        %v360 = vand.u32 2147483647, %v335
        %vm361 = vcmp.eq.f32.partialorder %v360, 8.507059e+37
        %v362 = vand.u32 %v335, 2147483648
        %v363 = vor.u32 1.1754944e-38, %v362
        %v364 = vsel %vm361, %v363, %v359
        %v365 = vmul.f32 1.0, %v364
        %vm366 = vcmask 130048
        %v368 = vsel %vm366, %v290, 0
        %v371 = vsel %vm366, %v291, 0
        %373 = vmatpush.msra.mxu0 0.0
        %374 = vmatpush.msra.mxu0 0.0
        %375 = vmatpush.msra.mxu0 0.0
        %376 = vmatpush.msra.mxu0 0.0
        %377 = vmatpush.msra.mxu0 0.0
        %378 = vmatpush.msra.mxu0 0.0
        %379 = vmatpush.msra.mxu0 0.0
        %380 = vmatpush.msra.mxu0 0.0
        %381 = vmatpush.msra.mxu0 0.0
        %382 = vmatpush.msra.mxu0 0.0
        %383 = vmatpush.msra.mxu0 0.0
        %384 = vmatpush.msra.mxu0 0.0
        %385 = vmatpush.msra.mxu0 0.0
        %386 = vmatpush.msra.mxu0 0.0
        %387 = vmatpush.msra.mxu0 %v365
        %388 = vmatpush.msra.mxu0 %v350
        %389 = vmatmul.f32.gmra.mxu0 %v368
        %v390 = vpop.f32.mrf.mxu0
        %v391 = vadd.f32 0.0, %v390
        %392 = vmatmul.f32.gmra.mxu0 %v371
        %v393 = vpop.f32.mrf.mxu0
        %v394 = vadd.f32 0.0, %v393
        %395 = vdwg.mxu0
        %v396 = vsel %vm366, %v391, -inf
        %v397 = vsel %vm366, %v394, -inf
        %v398 = vmax.f32 %v396, %v397
        %v399 = vrot.slane %v398, 4
        %v400 = vmax.f32 %v398, %v399
        %v401 = vrot.slane %v400, 2
        %v402 = vmax.f32 %v400, %v401
        %v403 = vrot.slane %v402, 1
        %v404 = vmax.f32 %v402, %v403
        %v405 = vsub.f32 %v391, %v404
        %v406 = vsub.f32 %v394, %v404
        %v407 = vmul.f32 %v405, 1.442695
        %v408 = vpow.pop %v407
        %v409 = vmul.f32 %v406, 1.442695
        %v410 = vpow.pop %v409
        %v411 = vsel %vm366, %v408, 0.0
        %v412 = vsel %vm366, %v410, 0.0
        %v413 = vadd.f32 %v411, %v412
        %v414 = vrot.slane %v413, 4
        %v415 = vadd.f32 %v413, %v414
        %v416 = vrot.slane %v415, 2
        %v417 = vadd.f32 %v415, %v416
        %v418 = vrot.slane %v417, 1
        %v419 = vadd.f32 %v417, %v418
        %v420 = vrcp.pop %v419
        %v421 = vmul.f32 %v419, %v420
        %v422 = vsub.f32 1.0, %v421
        %v423 = vmul.f32 %v420, %v422
        %v424 = vadd.f32 %v420, %v423
        %vm425 = vweird.f32 %v419
        %vm426 = vweird.f32 %v420
        %vm427 = vmor %vm425, %vm426
        %v428 = vsel %vm427, %v420, %v424
        %v429 = vand.u32 2147483647, %v419
        %vm430 = vcmp.eq.f32.partialorder %v429, 8.507059e+37
        %v431 = vand.u32 %v419, 2147483648
        %v432 = vor.u32 1.1754944e-38, %v431
        %v433 = vsel %vm430, %v432, %v428
        %v434 = vmul.f32 %v408, %v433
        %v435 = vmul.f32 %v410, %v433
        %436 = vst.msk [vmem:[%s218] sm:$0xff] %vm366, %v434
        %437 = vst.msk [vmem:[%s218 + $0x8] sm:$0xff] %vm366, %v435
        %s438 = sand.u32 %s137, 1
        %s439 = scalar_lea.sflag [#allocation3], %s438
        %s440 = sand.u32 %s137, 1
        %s441 = smul.addr %s440, 16
        %s442 = scalar_lea.vmem [#allocation2], %s441
        // Predicated region
        $region41: #{tpu_custom_call.1} parent=39 // pred_check
          %p443 = pneg %p147
        $region42: #{tpu_custom_call.1} parent=39 // pred_check_branch
          %445 = sbr.rel (%p443) target = $region44
        $region43: #{tpu_custom_call.1} parent=39 // pred_region
          %447 = vsyncadd %s439, 0
          %s448 = smul.addr %s19, 2
          %s449 = smul.addr %s448, 8
          %s450 = scalar_lea.hbm %s5, %s449
          %s451 = sshll.u32 %s442, 4
          %s452 = int_to_ptr.vmem [resolvable:$true] %s451
          %s453 = sshll.u32 %s450, 4
          %s454 = int_to_ptr.hbm [resolvable:$true] %s453
          %459 = dma.vmem_to_hbm [thread:$0]  %s452, 256, %s454, %s439, 128, 128, 8
        $region44: #{tpu_custom_call.1} parent=39 // pred_fallthru
          _
      $region40: #{tpu_custom_call.1} parent=5 // pred_fallthru
        _
      %p460 = scmp.le.s32.totalorder 2, %s14
      // Predicated region
      $region45: #{tpu_custom_call.1} parent=5 // pred_check
        %p461 = pneg %p460
      $region46: #{tpu_custom_call.1} parent=5 // pred_check_branch
        %463 = sbr.rel (%p461) target = $region48
      $region47: #{tpu_custom_call.1} parent=5 // pred_region
        %s464 = ssub.s32 %s14, 2
        // Predicated region
        $region49: #{tpu_custom_call.1} parent=47 // pred_check
          %p465 = pneg %p153
        $region50: #{tpu_custom_call.1} parent=47 // pred_check_branch
          %467 = sbr.rel (%p465) target = $region52
        $region51: #{tpu_custom_call.1} parent=47 // pred_region
          %s468 = sand.u32 %s138, 1
          %s469 = scalar_lea.sflag [#allocation3], %s468
          %s470 = sand.u32 %s138, 1
          %s471 = smul.addr %s470, 16
          %s472 = scalar_lea.vmem [#allocation2], %s471
          %474 = dma.done %s469, 256
        $region52: #{tpu_custom_call.1} parent=47 // pred_fallthru
          _
      $region48: #{tpu_custom_call.1} parent=5 // pred_fallthru
        _
    $region6: #{tpu_custom_call.1} parent=1 // loop_footer
      %s18 = sadd.s32 1, %s14
    $region7: #{tpu_custom_call.1} parent=1 // loop_footer_branch
      %13 = sbr.rel target = $region3
    $region8: #{tpu_custom_call.1} parent=1 // loop_exit
      _
    %475 = vsyncpa [#allocation3], 1
    %s476 = scalar_lea.sflag [#allocation3], 1
    %477 = vsyncpa %s476, 1

</llo_original>
